<compile_context>
chip_gen: v7x
topology: tpu7x:2x2x1
jax: 0.10.0
libtpu: 0.0.40
codegen_flags: <defaults>
</compile_context>

<pallas_src>
import jax
import jax.numpy as jnp
from jax.experimental import pallas as pl
from jax.experimental.pallas import tpu as pltpu


def _round_up(n, m):
    return ((n + m - 1) // m) * m


def _cdiv(a, b):
    return -(-a // b)


def _physical_vmem_bytes():
    try:
        return int(pltpu.get_tpu_info().vmem_capacity_bytes)
    except Exception:
        return 64 << 20  # conservative default: v7x per-TC VMEM


def _const_spec(shape, pipeline_mode):
    """BlockSpec for a VMEM-resident constant (weights / biases)."""
    if pipeline_mode is None:
        return pl.BlockSpec(shape, lambda i: (0, 0))
    return pl.BlockSpec(shape, lambda i: (0, 0), pipeline_mode=pipeline_mode)


# --------------------------------------------------------------------------- #
# Kernel
# --------------------------------------------------------------------------- #
def _make_mlp_kernel(num_layers):
    """Fused MLP kernel for `num_layers` Linear layers with ReLU between them."""

    def kernel(*refs):
        x_ref, o_ref = refs[0], refs[-1]
        h = x_ref[...]
        for i in range(num_layers):
            w_ref = refs[1 + 2 * i]
            b_ref = refs[2 + 2 * i]
            # bf16 operands on the MXU, f32 accumulation; bias add in f32.
            h32 = jnp.dot(h.astype(w_ref.dtype), w_ref[...],
                          preferred_element_type=jnp.float32) + b_ref[...]
            if i < num_layers - 1:
                # Carry the hidden activation in bf16 between layers; ReLU on
                # the bf16 value (max(.,0) commutes with the monotone cast).
                h = jnp.maximum(h32.astype(w_ref.dtype), 0)
            else:
                h = h32  # final layer: no activation (activation_final=None)
        o_ref[...] = h.astype(o_ref.dtype)

    return kernel


# --------------------------------------------------------------------------- #
# Parameter preparation (hoisted out of the per-call path)
# --------------------------------------------------------------------------- #
def prepare_params(params, *, lane=128, compute_dtype=jnp.bfloat16):
    """Pre-transpose torch-style (out,in) weights to (in,out), zero-pad HIDDEN
    feature dims to multiples of `lane`, cast weights to compute_dtype.

    The input feature dim and the FINAL output dim are left unpadded so the
    kernel never reads/writes padded x / y columns from HBM.  Zero-padded
    hidden columns stay exactly zero through bias-pad + ReLU (relies on
    activation(0) == 0 -- revisit if non-ReLU activations / norms are added).
    """
    prepped = []
    layer_dims = []
    prev_pad = params[0][0].shape[1]  # = d_in, unpadded
    n = len(params)
    for idx, (w, b) in enumerate(params):
        out_dim, cur_in = w.shape
        layer_dims.append((cur_in, out_dim))
        last = idx == n - 1
        out_pad = out_dim if last else _round_up(out_dim, lane)
        wt = jnp.asarray(w).T.astype(compute_dtype)                 # (in, out)
        wt = jnp.pad(wt, ((0, prev_pad - cur_in), (0, out_pad - out_dim)))
        bp = jnp.pad(jnp.asarray(b).astype(jnp.float32),
                     (0, out_pad - out_dim)).reshape(1, out_pad)
        prepped.append((wt, bp))
        prev_pad = out_pad
    return prepped, layer_dims


# --------------------------------------------------------------------------- #
# Forward
# --------------------------------------------------------------------------- #
def mlp_forward(x, prepped, layer_dims, *, tm_max=2048):
    """x: (B, d_in) f32.  prepped/layer_dims: output of prepare_params."""
    B, d_in = x.shape
    num_layers = len(prepped)
    d_out = layer_dims[-1][1]
    assert prepped[-1][0].shape[1] == d_out

    # ---- Batch tiling: minimal padding; >= 2 (even) grid steps when B >= 16
    # so dimension_semantics=("parallel",) shards across v7x's 2 TensorCores.
    n_tiles = _cdiv(B, tm_max)
    if B >= 16:
        n_tiles = max(n_tiles, 2)
        if n_tiles % 2:
            n_tiles += 1
    tm = max(8, _round_up(_cdiv(B, n_tiles), 8))
    b_pad = _round_up(B, tm)
    if b_pad != B:
        x = jnp.pad(x, ((0, b_pad - B), (0, 0)))
    grid = (b_pad // tm,)

    # ---- VMEM budget (per TensorCore; each TC holds its own weight copy).
    x_itemsize = jnp.dtype(x.dtype).itemsize
    weight_bytes = sum(
        int(w.size) * jnp.dtype(w.dtype).itemsize
        + int(b.size) * jnp.dtype(b.dtype).itemsize
        for (w, b) in prepped
    )
    io_bytes = 2 * tm * d_in * x_itemsize + 2 * tm * d_out * 4
    needed = 2 * weight_bytes + io_bytes + (8 << 20)   # 2x in case Buffered(1) is rejected
    cap = max(32 << 20, (_physical_vmem_bytes() * 3) // 4)  # ~48 MiB v7x, ~96 MiB v5e/v6e
    vmem_limit = int(min(max(needed, 16 << 20), cap))

    # ---- Cost estimate from the UNPADDED layer dims (advisory only).
    flops = sum(2 * B * fi * fo for (fi, fo) in layer_dims)
    bytes_accessed = int(B * d_in * x_itemsize + B * d_out * 4
                         + sum(fi * fo * 2 + fo * 4 for (fi, fo) in layer_dims))
    cost = pl.CostEstimate(flops=flops, transcendentals=0,
                           bytes_accessed=bytes_accessed)

    out_specs = pl.BlockSpec((tm, d_out), lambda i: (i, 0))
    args = [x]
    for (w, b) in prepped:
        args.append(w)
        args.append(b)

    def _run(weight_mode):
        in_specs = [pl.BlockSpec((tm, d_in), lambda i: (i, 0))]
        for (w, b) in prepped:
            in_specs.append(_const_spec(w.shape, weight_mode))
            in_specs.append(_const_spec(b.shape, weight_mode))
        out = pl.pallas_call(
            _make_mlp_kernel(num_layers),
            grid=grid,
            in_specs=in_specs,
            out_specs=out_specs,
            out_shape=jax.ShapeDtypeStruct((b_pad, d_out), jnp.float32),
            compiler_params=pltpu.CompilerParams(
                dimension_semantics=("parallel",),
                vmem_limit_bytes=vmem_limit,
            ),
            cost_estimate=cost,
        )(*args)
        return jax.block_until_ready(out)

    try:
        # Constant-index weights don't need double buffering: halves their
        # resident VMEM (matters on v7x's 64 MiB per-TC VMEM as `units` grows).
        out = _run(pl.Buffered(1))
    except Exception:
        # Fallback: default double-buffering if this jax build rejects
        # Buffered(1) on a pallas_call BlockSpec.
        out = _run(None)

    return out if b_pad == B else out[:B]


# --------------------------------------------------------------------------- #
# Init + references
# --------------------------------------------------------------------------- #
def init_params(key, units):
    """torch.nn.Linear-style init: U(-1/sqrt(fan_in), 1/sqrt(fan_in))."""
    params = []
    for i in range(len(units) - 1):
        fan_in, fan_out = units[i], units[i + 1]
        key, kw, kb = jax.random.split(key, 3)
        bound = 1.0 / jnp.sqrt(fan_in)
        w = jax.random.uniform(kw, (fan_out, fan_in), jnp.float32, -bound, bound)
        b = jax.random.uniform(kb, (fan_out,), jnp.float32, -bound, bound)
        params.append((w, b))
    return params


def mlp_reference_f32(x, params):
    """Pure-f32 reference (matches the PyTorch module math)."""
    h = x
    n = len(params)
    for i, (w, b) in enumerate(params):
        h = h @ w.T + b
        if i < n - 1:
            h = jnp.maximum(h, 0.0)
    return h


def mlp_reference_matched(x, params, compute_dtype=jnp.bfloat16):
    """Reference with the same math as the kernel (bf16 operands, f32 accum)."""
    h = x
    n = len(params)
    for i, (w, b) in enumerate(params):
        h = jnp.dot(h.astype(compute_dtype), w.T.astype(compute_dtype),
                    preferred_element_type=jnp.float32) + b
        if i < n - 1:
            h = jnp.maximum(h, 0.0)
    return h


# --------------------------------------------------------------------------- #
if __name__ == "__main__":
    units = [5, 32, 32, 1]   # MLP(units=[5, 32, 32, 1]) with default relu activations
    batch = 8

    key = jax.random.PRNGKey(0)
    key, kx = jax.random.split(key)
    x = jax.random.normal(kx, (batch, units[0]), jnp.float32)
    params = init_params(key, units)

    # One-time parameter prep (transposes / lane padding / bf16 cast hoisted here).
    prepped, layer_dims = prepare_params(params)

    out = mlp_forward(x, prepped, layer_dims)
    out = jax.block_until_ready(out)

    assert out.shape == (batch, units[-1])

    # Tight check against a reference that does the exact same bf16/f32 math.
    ref_matched = mlp_reference_matched(x, params)
    assert jnp.allclose(out, ref_matched, atol=1e-3, rtol=1e-3), \
        "mismatch vs bf16-matched reference"

    # Looser check against the full-f32 reference (module semantics).
    ref_f32 = mlp_reference_f32(x, params)
    assert jnp.allclose(out, ref_f32, atol=5e-2, rtol=5e-2), \
        "mismatch vs f32 reference"

    print("KERNEL_OK")
</pallas_src>

<mosaic_0001>
module attributes {stable_mosaic.version = 11 : i64} {
  func.func @kernel(%arg0: i32, %arg1: memref<8x5xf32, #tpu.memory_space<vmem>>, %arg2: memref<5x128xbf16, #tpu.memory_space<vmem>>, %arg3: memref<1x128xf32, #tpu.memory_space<vmem>>, %arg4: memref<128x128xbf16, #tpu.memory_space<vmem>>, %arg5: memref<1x128xf32, #tpu.memory_space<vmem>>, %arg6: memref<128x1xbf16, #tpu.memory_space<vmem>>, %arg7: memref<1x1xf32, #tpu.memory_space<vmem>>, %arg8: memref<8x1xf32, #tpu.memory_space<vmem>>) attributes {dimension_semantics = [#tpu.dimension_semantics<parallel>], iteration_bounds = array<i64: 1>, scalar_prefetch = 0 : i64, scratch_operands = 0 : i64, tpu.core_type = #tpu.core_type<tc>, window_params = [{transform_indices = @transform_0, window_bounds = array<i64: 8, 5>}, {pipeline_mode = #tpu.pipeline_mode<synchronous>, transform_indices = @transform_1, window_bounds = array<i64: 5, 128>}, {pipeline_mode = #tpu.pipeline_mode<synchronous>, transform_indices = @transform_2, window_bounds = array<i64: 1, 128>}, {pipeline_mode = #tpu.pipeline_mode<synchronous>, transform_indices = @transform_3, window_bounds = array<i64: 128, 128>}, {pipeline_mode = #tpu.pipeline_mode<synchronous>, transform_indices = @transform_4, window_bounds = array<i64: 1, 128>}, {pipeline_mode = #tpu.pipeline_mode<synchronous>, transform_indices = @transform_5, window_bounds = array<i64: 128, 1>}, {pipeline_mode = #tpu.pipeline_mode<synchronous>, transform_indices = @transform_6, window_bounds = array<i64: 1, 1>}, {transform_indices = @transform_7, window_bounds = array<i64: 8, 1>}]} {
    %c0 = arith.constant 0 : index
    %c0_0 = arith.constant 0 : index
    %0 = vector.load %arg1[%c0, %c0_0] : memref<8x5xf32, #tpu.memory_space<vmem>>, vector<8x5xf32>
    %1 = arith.truncf %0 : vector<8x5xf32> to vector<8x5xbf16>
    %c0_1 = arith.constant 0 : index
    %c0_2 = arith.constant 0 : index
    %2 = vector.load %arg2[%c0_1, %c0_2] : memref<5x128xbf16, #tpu.memory_space<vmem>>, vector<5x128xbf16>
    %cst = arith.constant dense<0.000000e+00> : vector<8x128xf32>
    %3 = tpu.matmul %1, %2, %cst {dimension_numbers = #tpu.dot_dimension_numbers<[1], [0], [0], [1], [0, 0, 1, 1], [], []>} : vector<8x5xbf16>, vector<5x128xbf16>, vector<8x128xf32> -> vector<8x128xf32>
    %c0_3 = arith.constant 0 : index
    %c0_4 = arith.constant 0 : index
    %4 = vector.load %arg3[%c0_3, %c0_4] : memref<1x128xf32, #tpu.memory_space<vmem>>, vector<1x128xf32>
    %5 = vector.broadcast %4 : vector<1x128xf32> to vector<8x128xf32>
    %6 = arith.addf %3, %5 : vector<8x128xf32>
    %7 = arith.truncf %6 : vector<8x128xf32> to vector<8x128xbf16>
    %cst_5 = arith.constant 0.000000e+00 : bf16
    %8 = vector.broadcast %cst_5 : bf16 to vector<8x128xbf16>
    %9 = arith.maximumf %7, %8 : vector<8x128xbf16>
    %c0_6 = arith.constant 0 : index
    %c0_7 = arith.constant 0 : index
    %10 = vector.load %arg4[%c0_6, %c0_7] : memref<128x128xbf16, #tpu.memory_space<vmem>>, vector<128x128xbf16>
    %cst_8 = arith.constant dense<0.000000e+00> : vector<8x128xf32>
    %11 = tpu.matmul %9, %10, %cst_8 {dimension_numbers = #tpu.dot_dimension_numbers<[1], [0], [0], [1], [0, 0, 1, 1], [], []>} : vector<8x128xbf16>, vector<128x128xbf16>, vector<8x128xf32> -> vector<8x128xf32>
    %c0_9 = arith.constant 0 : index
    %c0_10 = arith.constant 0 : index
    %12 = vector.load %arg5[%c0_9, %c0_10] : memref<1x128xf32, #tpu.memory_space<vmem>>, vector<1x128xf32>
    %13 = vector.broadcast %12 : vector<1x128xf32> to vector<8x128xf32>
    %14 = arith.addf %11, %13 : vector<8x128xf32>
    %15 = arith.truncf %14 : vector<8x128xf32> to vector<8x128xbf16>
    %cst_11 = arith.constant 0.000000e+00 : bf16
    %16 = vector.broadcast %cst_11 : bf16 to vector<8x128xbf16>
    %17 = arith.maximumf %15, %16 : vector<8x128xbf16>
    %c0_12 = arith.constant 0 : index
    %c0_13 = arith.constant 0 : index
    %18 = vector.load %arg6[%c0_12, %c0_13] : memref<128x1xbf16, #tpu.memory_space<vmem>>, vector<128x1xbf16>
    %cst_14 = arith.constant dense<0.000000e+00> : vector<8x1xf32>
    %19 = tpu.matmul %17, %18, %cst_14 {dimension_numbers = #tpu.dot_dimension_numbers<[1], [0], [0], [1], [0, 0, 1, 1], [], []>} : vector<8x128xbf16>, vector<128x1xbf16>, vector<8x1xf32> -> vector<8x1xf32>
    %c0_15 = arith.constant 0 : index
    %c0_16 = arith.constant 0 : index
    %20 = vector.load %arg7[%c0_15, %c0_16] : memref<1x1xf32, #tpu.memory_space<vmem>>, vector<1x1xf32>
    %21 = vector.broadcast %20 : vector<1x1xf32> to vector<8x1xf32>
    %22 = arith.addf %19, %21 : vector<8x1xf32>
    %c0_17 = arith.constant 0 : index
    %c0_18 = arith.constant 0 : index
    %23 = vector.load %arg8[%c0_17, %c0_18] : memref<8x1xf32, #tpu.memory_space<vmem>>, vector<8x1xf32>
    tpu.vector_store %arg8[%c0_17, %c0_18], %22 {strides = array<i32>} : memref<8x1xf32, #tpu.memory_space<vmem>>, vector<8x1xf32>,
    return
  }
  func.func @transform_0(%arg0: i32) -> (i32, i32) {
    %c0_i32 = arith.constant 0 : i32
    %c0_i32_0 = arith.constant 0 : i32
    return %arg0, %c0_i32 : i32, i32
  }
  func.func @transform_1(%arg0: i32) -> (i32, i32) {
    %c0_i32 = arith.constant 0 : i32
    %c0_i32_0 = arith.constant 0 : i32
    %c0_i32_1 = arith.constant 0 : i32
    return %c0_i32, %c0_i32_0 : i32, i32
  }
  func.func @transform_2(%arg0: i32) -> (i32, i32) {
    %c0_i32 = arith.constant 0 : i32
    %c0_i32_0 = arith.constant 0 : i32
    %c0_i32_1 = arith.constant 0 : i32
    return %c0_i32, %c0_i32_0 : i32, i32
  }
  func.func @transform_3(%arg0: i32) -> (i32, i32) {
    %c0_i32 = arith.constant 0 : i32
    %c0_i32_0 = arith.constant 0 : i32
    %c0_i32_1 = arith.constant 0 : i32
    return %c0_i32, %c0_i32_0 : i32, i32
  }
  func.func @transform_4(%arg0: i32) -> (i32, i32) {
    %c0_i32 = arith.constant 0 : i32
    %c0_i32_0 = arith.constant 0 : i32
    %c0_i32_1 = arith.constant 0 : i32
    return %c0_i32, %c0_i32_0 : i32, i32
  }
  func.func @transform_5(%arg0: i32) -> (i32, i32) {
    %c0_i32 = arith.constant 0 : i32
    %c0_i32_0 = arith.constant 0 : i32
    %c0_i32_1 = arith.constant 0 : i32
    return %c0_i32, %c0_i32_0 : i32, i32
  }
  func.func @transform_6(%arg0: i32) -> (i32, i32) {
    %c0_i32 = arith.constant 0 : i32
    %c0_i32_0 = arith.constant 0 : i32
    %c0_i32_1 = arith.constant 0 : i32
    return %c0_i32, %c0_i32_0 : i32, i32
  }
  func.func @transform_7(%arg0: i32) -> (i32, i32) {
    %c0_i32 = arith.constant 0 : i32
    %c0_i32_0 = arith.constant 0 : i32
    return %arg0, %c0_i32 : i32, i32
  }
}

module attributes {stable_mosaic.version = 11 : i64} {
  func.func @kernel(%arg0: i32, %arg1: memref<8x5xf32, #tpu.memory_space<vmem>>, %arg2: memref<5x128xbf16, #tpu.memory_space<vmem>>, %arg3: memref<1x128xf32, #tpu.memory_space<vmem>>, %arg4: memref<128x128xbf16, #tpu.memory_space<vmem>>, %arg5: memref<1x128xf32, #tpu.memory_space<vmem>>, %arg6: memref<128x1xbf16, #tpu.memory_space<vmem>>, %arg7: memref<1x1xf32, #tpu.memory_space<vmem>>, %arg8: memref<8x1xf32, #tpu.memory_space<vmem>>) attributes {dimension_semantics = [#tpu.dimension_semantics<parallel>], iteration_bounds = array<i64: 1>, scalar_prefetch = 0 : i64, scratch_operands = 0 : i64, tpu.core_type = #tpu.core_type<tc>, window_params = [{transform_indices = @transform_0, window_bounds = array<i64: 8, 5>}, {pipeline_mode = #tpu.pipeline_mode<synchronous>, transform_indices = @transform_1, window_bounds = array<i64: 5, 128>}, {pipeline_mode = #tpu.pipeline_mode<synchronous>, transform_indices = @transform_2, window_bounds = array<i64: 1, 128>}, {pipeline_mode = #tpu.pipeline_mode<synchronous>, transform_indices = @transform_3, window_bounds = array<i64: 128, 128>}, {pipeline_mode = #tpu.pipeline_mode<synchronous>, transform_indices = @transform_4, window_bounds = array<i64: 1, 128>}, {pipeline_mode = #tpu.pipeline_mode<synchronous>, transform_indices = @transform_5, window_bounds = array<i64: 128, 1>}, {pipeline_mode = #tpu.pipeline_mode<synchronous>, transform_indices = @transform_6, window_bounds = array<i64: 1, 1>}, {transform_indices = @transform_7, window_bounds = array<i64: 8, 1>}]} {
    %c0 = arith.constant 0 : index
    %c0_0 = arith.constant 0 : index
    %0 = vector.load %arg1[%c0, %c0_0] : memref<8x5xf32, #tpu.memory_space<vmem>>, vector<8x5xf32>
    %1 = arith.truncf %0 : vector<8x5xf32> to vector<8x5xbf16>
    %c0_1 = arith.constant 0 : index
    %c0_2 = arith.constant 0 : index
    %2 = vector.load %arg2[%c0_1, %c0_2] : memref<5x128xbf16, #tpu.memory_space<vmem>>, vector<5x128xbf16>
    %cst = arith.constant dense<0.000000e+00> : vector<8x128xf32>
    %3 = tpu.matmul %1, %2, %cst {dimension_numbers = #tpu.dot_dimension_numbers<[1], [0], [0], [1], [0, 0, 1, 1], [], []>} : vector<8x5xbf16>, vector<5x128xbf16>, vector<8x128xf32> -> vector<8x128xf32>
    %c0_3 = arith.constant 0 : index
    %c0_4 = arith.constant 0 : index
    %4 = vector.load %arg3[%c0_3, %c0_4] : memref<1x128xf32, #tpu.memory_space<vmem>>, vector<1x128xf32>
    %5 = vector.broadcast %4 : vector<1x128xf32> to vector<8x128xf32>
    %6 = arith.addf %3, %5 : vector<8x128xf32>
    %7 = arith.truncf %6 : vector<8x128xf32> to vector<8x128xbf16>
    %cst_5 = arith.constant 0.000000e+00 : bf16
    %8 = vector.broadcast %cst_5 : bf16 to vector<8x128xbf16>
    %9 = arith.maximumf %7, %8 : vector<8x128xbf16>
    %c0_6 = arith.constant 0 : index
    %c0_7 = arith.constant 0 : index
    %10 = vector.load %arg4[%c0_6, %c0_7] : memref<128x128xbf16, #tpu.memory_space<vmem>>, vector<128x128xbf16>
    %cst_8 = arith.constant dense<0.000000e+00> : vector<8x128xf32>
    %11 = tpu.matmul %9, %10, %cst_8 {dimension_numbers = #tpu.dot_dimension_numbers<[1], [0], [0], [1], [0, 0, 1, 1], [], []>} : vector<8x128xbf16>, vector<128x128xbf16>, vector<8x128xf32> -> vector<8x128xf32>
    %c0_9 = arith.constant 0 : index
    %c0_10 = arith.constant 0 : index
    %12 = vector.load %arg5[%c0_9, %c0_10] : memref<1x128xf32, #tpu.memory_space<vmem>>, vector<1x128xf32>
    %13 = vector.broadcast %12 : vector<1x128xf32> to vector<8x128xf32>
    %14 = arith.addf %11, %13 : vector<8x128xf32>
    %15 = arith.truncf %14 : vector<8x128xf32> to vector<8x128xbf16>
    %cst_11 = arith.constant 0.000000e+00 : bf16
    %16 = vector.broadcast %cst_11 : bf16 to vector<8x128xbf16>
    %17 = arith.maximumf %15, %16 : vector<8x128xbf16>
    %c0_12 = arith.constant 0 : index
    %c0_13 = arith.constant 0 : index
    %18 = vector.load %arg6[%c0_12, %c0_13] : memref<128x1xbf16, #tpu.memory_space<vmem>>, vector<128x1xbf16>
    %cst_14 = arith.constant dense<0.000000e+00> : vector<8x1xf32>
    %19 = tpu.matmul %17, %18, %cst_14 {dimension_numbers = #tpu.dot_dimension_numbers<[1], [0], [0], [1], [0, 0, 1, 1], [], []>} : vector<8x128xbf16>, vector<128x1xbf16>, vector<8x1xf32> -> vector<8x1xf32>
    %c0_15 = arith.constant 0 : index
    %c0_16 = arith.constant 0 : index
    %20 = vector.load %arg7[%c0_15, %c0_16] : memref<1x1xf32, #tpu.memory_space<vmem>>, vector<1x1xf32>
    %21 = vector.broadcast %20 : vector<1x1xf32> to vector<8x1xf32>
    %22 = arith.addf %19, %21 : vector<8x1xf32>
    %c0_17 = arith.constant 0 : index
    %c0_18 = arith.constant 0 : index
    %23 = vector.load %arg8[%c0_17, %c0_18] : memref<8x1xf32, #tpu.memory_space<vmem>>, vector<8x1xf32>
    tpu.vector_store %arg8[%c0_17, %c0_18], %22 {strides = array<i32>} : memref<8x1xf32, #tpu.memory_space<vmem>>, vector<8x1xf32>,
    return
  }
  func.func @transform_0(%arg0: i32) -> (i32, i32) {
    %c0_i32 = arith.constant 0 : i32
    %c0_i32_0 = arith.constant 0 : i32
    return %arg0, %c0_i32 : i32, i32
  }
  func.func @transform_1(%arg0: i32) -> (i32, i32) {
    %c0_i32 = arith.constant 0 : i32
    %c0_i32_0 = arith.constant 0 : i32
    %c0_i32_1 = arith.constant 0 : i32
    return %c0_i32, %c0_i32_0 : i32, i32
  }
  func.func @transform_2(%arg0: i32) -> (i32, i32) {
    %c0_i32 = arith.constant 0 : i32
    %c0_i32_0 = arith.constant 0 : i32
    %c0_i32_1 = arith.constant 0 : i32
    return %c0_i32, %c0_i32_0 : i32, i32
  }
  func.func @transform_3(%arg0: i32) -> (i32, i32) {
    %c0_i32 = arith.constant 0 : i32
    %c0_i32_0 = arith.constant 0 : i32
    %c0_i32_1 = arith.constant 0 : i32
    return %c0_i32, %c0_i32_0 : i32, i32
  }
  func.func @transform_4(%arg0: i32) -> (i32, i32) {
    %c0_i32 = arith.constant 0 : i32
    %c0_i32_0 = arith.constant 0 : i32
    %c0_i32_1 = arith.constant 0 : i32
    return %c0_i32, %c0_i32_0 : i32, i32
  }
  func.func @transform_5(%arg0: i32) -> (i32, i32) {
    %c0_i32 = arith.constant 0 : i32
    %c0_i32_0 = arith.constant 0 : i32
    %c0_i32_1 = arith.constant 0 : i32
    return %c0_i32, %c0_i32_0 : i32, i32
  }
  func.func @transform_6(%arg0: i32) -> (i32, i32) {
    %c0_i32 = arith.constant 0 : i32
    %c0_i32_0 = arith.constant 0 : i32
    %c0_i32_1 = arith.constant 0 : i32
    return %c0_i32, %c0_i32_0 : i32, i32
  }
  func.func @transform_7(%arg0: i32) -> (i32, i32) {
    %c0_i32 = arith.constant 0 : i32
    %c0_i32_0 = arith.constant 0 : i32
    return %arg0, %c0_i32 : i32, i32
  }
}

</mosaic_0001>

<llo_original>
// kernel: tpu_custom_call.1
$region0: #{tpu_custom_call.1}
  #allocation0 [shape = 'u32[]', space=smem, size = 0x4, offset = 0x4, fixed_abs, tag = 'smem constant byte address 0x4 - core index']
  #allocation1 [shape = 'u32[144,128]{1,0:T(1,128)}', space=vmem, size = 0x12000, scoped, tag = 'internal scratch']
  #allocation2 [shape = 'f32[1,1]{1,0:T(1,128)S(1)}', space=vmem, size = 0x200, scoped, tag = 'scoped memory for tpu_custom_call.1']
  %s0 = inlined_call_operand.vmem [shape: f32[8,5], index: 0, kind: input, shape index: {}]
  %s1 = inlined_call_operand.vmem [shape: bf16[5,128], index: 1, kind: input, shape index: {}]
  %s2 = inlined_call_operand.vmem [shape: f32[1,128], index: 2, kind: input, shape index: {}]
  %s3 = inlined_call_operand.vmem [shape: bf16[128,128], index: 3, kind: input, shape index: {}]
  %s4 = inlined_call_operand.vmem [shape: f32[1,128], index: 4, kind: input, shape index: {}]
  %s5 = inlined_call_operand.vmem [shape: bf16[128,1], index: 5, kind: input, shape index: {}]
  %s6 = inlined_call_operand.<no memory space> [shape: f32[1,1], index: 6, kind: input, shape index: {}]
  %s7 = inlined_call_operand.vmem [shape: f32[8,1], index: 7, kind: output, shape index: {}]
  %s8 = sld [smem:[#allocation0]]
  $region38: #{tpu_custom_call.1} parent=0
    _
  %s10 = ssub.s32 1, %s8
  %s11 = scalar_select 0, %s10, %s8
  %v12 = vstv %s6
  %13 = vst [vmem:[#allocation2] sm:$0x1] %v12
  // Predicated region
  $region2: #{tpu_custom_call.1} parent=0 // pred_check
    _
  $region3: #{tpu_custom_call.1} parent=0 // pred_check_branch
    %15 = sbr.rel (0) target = $region5
  $region4: #{tpu_custom_call.1} parent=0 // pred_region
    _
  $region5: #{tpu_custom_call.1} parent=0 // pred_fallthru
    _
  // Predicated region
  $region6: #{tpu_custom_call.1} parent=0 // pred_check
    _
  $region7: #{tpu_custom_call.1} parent=0 // pred_check_branch
    %17 = sbr.rel (0) target = $region9
  $region8: #{tpu_custom_call.1} parent=0 // pred_region
    _
  $region9: #{tpu_custom_call.1} parent=0 // pred_fallthru
    _
  // Predicated region
  $region10: #{tpu_custom_call.1} parent=0 // pred_check
    _
  $region11: #{tpu_custom_call.1} parent=0 // pred_check_branch
    %19 = sbr.rel (0) target = $region13
  $region12: #{tpu_custom_call.1} parent=0 // pred_region
    _
  $region13: #{tpu_custom_call.1} parent=0 // pred_fallthru
    _
  // Predicated region
  $region14: #{tpu_custom_call.1} parent=0 // pred_check
    _
  $region15: #{tpu_custom_call.1} parent=0 // pred_check_branch
    %21 = sbr.rel (0) target = $region17
  $region16: #{tpu_custom_call.1} parent=0 // pred_region
    _
  $region17: #{tpu_custom_call.1} parent=0 // pred_fallthru
    _
  // Predicated region
  $region18: #{tpu_custom_call.1} parent=0 // pred_check
    _
  $region19: #{tpu_custom_call.1} parent=0 // pred_check_branch
    %23 = sbr.rel (0) target = $region21
  $region20: #{tpu_custom_call.1} parent=0 // pred_region
    _
  $region21: #{tpu_custom_call.1} parent=0 // pred_fallthru
    _
  // Predicated region
  $region22: #{tpu_custom_call.1} parent=0 // pred_check
    _
  $region23: #{tpu_custom_call.1} parent=0 // pred_check_branch
    %25 = sbr.rel (0) target = $region25
  $region24: #{tpu_custom_call.1} parent=0 // pred_region
    _
  $region25: #{tpu_custom_call.1} parent=0 // pred_fallthru
    _
  // Predicated region
  $region26: #{tpu_custom_call.1} parent=0 // pred_check
    _
  $region27: #{tpu_custom_call.1} parent=0 // pred_check_branch
    %27 = sbr.rel (0) target = $region29
  $region28: #{tpu_custom_call.1} parent=0 // pred_region
    _
  $region29: #{tpu_custom_call.1} parent=0 // pred_fallthru
    _
  %v29 = vld [vmem:[%s0] sm:$0xff]
  %v30 = vpack.c.bf16 %v29, %v29
  %v31 = vld [vmem:[%s1] sm:$0x7]
  %v32 = vld [vmem:[%s2] sm:$0x1]
  %v34 = vlaneseq
  %v35 = vshrl.u32 %v34, 7
  %v36 = vsub.s32 0, %v35
  %v37 = vrot.slane %v32, %v36
  %vm39 = vcmask 39936
  %v41 = vsel %vm39, %v30, 0
  %vm43 = vcmask 1041408
  %vm44 = vcmask 1042432
  %v45 = vsel %vm43, 4294967295, 65535
  %v46 = vsel %vm44, %v45, 0
  %v48 = vand.u32 %v31, %v46
  %50 = vmatprep.subr.bf16.mxu0 0
  %51 = vmatpush1.bf16.msra.mxu0 %v48
  %52 = vmatprep.subr.bf16.mxu0 0
  %53 = vmatpush1.bf16.msra.mxu0 0
  %54 = vmatprep.subr.bf16.mxu0 0
  %55 = vmatpush1.bf16.msra.mxu0 0
  %56 = vmatprep.subr.bf16.mxu0 0
  %57 = vmatpush1.bf16.msra.mxu0 0
  %58 = vmatprep.subr.bf16.mxu0 0
  %59 = vmatpush1.bf16.msra.mxu0 0
  %60 = vmatprep.subr.bf16.mxu0 0
  %61 = vmatpush1.bf16.msra.mxu0 0
  %62 = vmatprep.subr.bf16.mxu0 0
  %63 = vmatpush1.bf16.msra.mxu0 0
  %64 = vmatprep.subr.bf16.mxu0 0
  %65 = vmatpush1.bf16.msra.mxu0 0
  %66 = vmatprep.subr.bf16.mxu0 0
  %67 = vmatpush1.bf16.msra.mxu0 0
  %68 = vmatprep.subr.bf16.mxu0 0
  %69 = vmatpush1.bf16.msra.mxu0 0
  %70 = vmatprep.subr.bf16.mxu0 0
  %71 = vmatpush1.bf16.msra.mxu0 0
  %72 = vmatprep.subr.bf16.mxu0 0
  %73 = vmatpush1.bf16.msra.mxu0 0
  %74 = vmatprep.subr.bf16.mxu0 0
  %75 = vmatpush1.bf16.msra.mxu0 0
  %76 = vmatprep.subr.bf16.mxu0 0
  %77 = vmatpush1.bf16.msra.mxu0 0
  %78 = vmatprep.subr.bf16.mxu0 0
  %79 = vmatpush1.bf16.msra.mxu0 0
  %80 = vmatprep.subr.bf16.mxu0 0
  %81 = vmatpush1.bf16.msra.mxu0 0
  %82 = vmatprep.mubr.bf16.mxu0 0
  %83 = vmatmul.mubr.bf16.gmra.mrb[0].mxu0 %v41
  %v84 = vpop.f32.mrb[0].mxu0
  %v85 = vadd.f32 %v37, %v84
  %v86 = vpop.f32.mrb[0].mxu0
  %v87 = vpop.f32.mrb[0].mxu0
  %v88 = vpop.f32.mrb[0].mxu0
  %89 = vdwg.mxu0
  %v90 = vpack.c.bf16 %v85, %v85
  %v91 = vmax.bf16 %v90, 0
  %v92 = vld [vmem:[%s3] sm:$0xf]
  %v93 = vld [vmem:[%s3 + $0x4] sm:$0xf]
  %v94 = vld [vmem:[%s3 + $0x8] sm:$0xf]
  %v95 = vld [vmem:[%s3 + $0xc] sm:$0xf]
  %v96 = vld [vmem:[%s3 + $0x10] sm:$0xf]
  %v97 = vld [vmem:[%s3 + $0x14] sm:$0xf]
  %v98 = vld [vmem:[%s3 + $0x18] sm:$0xf]
  %v99 = vld [vmem:[%s3 + $0x1c] sm:$0xf]
  %v100 = vld [vmem:[%s3 + $0x20] sm:$0xf]
  %v101 = vld [vmem:[%s3 + $0x24] sm:$0xf]
  %v102 = vld [vmem:[%s3 + $0x28] sm:$0xf]
  %v103 = vld [vmem:[%s3 + $0x2c] sm:$0xf]
  %v104 = vld [vmem:[%s3 + $0x30] sm:$0xf]
  %v105 = vld [vmem:[%s3 + $0x34] sm:$0xf]
  %v106 = vld [vmem:[%s3 + $0x38] sm:$0xf]
  %v107 = vld [vmem:[%s3 + $0x3c] sm:$0xf]
  %v108 = vld [vmem:[%s4] sm:$0x1]
  %v110 = vlaneseq
  %v111 = vshrl.u32 %v110, 7
  %v112 = vsub.s32 0, %v111
  %v113 = vrot.slane %v108, %v112
  %v131 = vunpack.c.l.b16 %v92
  %v132 = vunpack.c.l.b16 %v93
  %v133 = vunpack.c.l.b16 %v94
  %v134 = vunpack.c.l.b16 %v95
  %v135 = vunpack.c.l.b16 %v96
  %v136 = vunpack.c.l.b16 %v97
  %v137 = vunpack.c.l.b16 %v98
  %v138 = vunpack.c.l.b16 %v99
  %v139 = vunpack.c.l.b16 %v100
  %v140 = vunpack.c.l.b16 %v101
  %v141 = vunpack.c.l.b16 %v102
  %v142 = vunpack.c.l.b16 %v103
  %v143 = vunpack.c.l.b16 %v104
  %v144 = vunpack.c.l.b16 %v105
  %v145 = vunpack.c.l.b16 %v106
  %v146 = vunpack.c.l.b16 %v107
  %v147 = vpack.c.b16 %v132, %v131
  %v148 = vpack.c.b16 %v134, %v133
  %v149 = vpack.c.b16 %v136, %v135
  %v150 = vpack.c.b16 %v138, %v137
  %v151 = vpack.c.b16 %v140, %v139
  %v152 = vpack.c.b16 %v142, %v141
  %v153 = vpack.c.b16 %v144, %v143
  %v154 = vpack.c.b16 %v146, %v145
  %163 = vmatprep.subr.bf16.mxu0 0
  %164 = vmatpush1.bf16.msra.mxu0 %v147
  %165 = vmatprep.subr.bf16.mxu0 0
  %166 = vmatpush1.bf16.msra.mxu0 %v148
  %167 = vmatprep.subr.bf16.mxu0 0
  %168 = vmatpush1.bf16.msra.mxu0 %v149
  %169 = vmatprep.subr.bf16.mxu0 0
  %170 = vmatpush1.bf16.msra.mxu0 %v150
  %171 = vmatprep.subr.bf16.mxu0 0
  %172 = vmatpush1.bf16.msra.mxu0 %v151
  %173 = vmatprep.subr.bf16.mxu0 0
  %174 = vmatpush1.bf16.msra.mxu0 %v152
  %175 = vmatprep.subr.bf16.mxu0 0
  %176 = vmatpush1.bf16.msra.mxu0 %v153
  %177 = vmatprep.subr.bf16.mxu0 0
  %178 = vmatpush1.bf16.msra.mxu0 %v154
  %179 = vmatprep.subr.bf16.mxu0 0
  %180 = vmatpush1.bf16.msra.mxu0 0
  %181 = vmatprep.subr.bf16.mxu0 0
  %182 = vmatpush1.bf16.msra.mxu0 0
  %183 = vmatprep.subr.bf16.mxu0 0
  %184 = vmatpush1.bf16.msra.mxu0 0
  %185 = vmatprep.subr.bf16.mxu0 0
  %186 = vmatpush1.bf16.msra.mxu0 0
  %187 = vmatprep.subr.bf16.mxu0 0
  %188 = vmatpush1.bf16.msra.mxu0 0
  %189 = vmatprep.subr.bf16.mxu0 0
  %190 = vmatpush1.bf16.msra.mxu0 0
  %191 = vmatprep.subr.bf16.mxu0 0
  %192 = vmatpush1.bf16.msra.mxu0 0
  %193 = vmatprep.subr.bf16.mxu0 0
  %194 = vmatpush1.bf16.msra.mxu0 0
  %195 = vmatprep.mubr.bf16.mxu0 0
  %196 = vmatmul.mubr.bf16.gmra.mrb[0].mxu0 %v91
  %v197 = vpop.f32.mrb[0].mxu0
  %v198 = vadd.f32 %v113, %v197
  %v199 = vpop.f32.mrb[0].mxu0
  %v200 = vpop.f32.mrb[0].mxu0
  %v201 = vpop.f32.mrb[0].mxu0
  %202 = vdwg.mxu0
  %v203 = vpack.c.bf16 %v198, %v198
  %v204 = vmax.bf16 %v203, 0
  %v205 = vld [vmem:[%s5] sm:$0xf]
  %v206 = vld [vmem:[%s5 + $0x4] sm:$0xf]
  %v207 = vld [vmem:[%s5 + $0x8] sm:$0xf]
  %v208 = vld [vmem:[%s5 + $0xc] sm:$0xf]
  %v209 = vld [vmem:[%s5 + $0x10] sm:$0xf]
  %v210 = vld [vmem:[%s5 + $0x14] sm:$0xf]
  %v211 = vld [vmem:[%s5 + $0x18] sm:$0xf]
  %v212 = vld [vmem:[%s5 + $0x1c] sm:$0xf]
  %v213 = vld [vmem:[%s5 + $0x20] sm:$0xf]
  %v214 = vld [vmem:[%s5 + $0x24] sm:$0xf]
  %v215 = vld [vmem:[%s5 + $0x28] sm:$0xf]
  %v216 = vld [vmem:[%s5 + $0x2c] sm:$0xf]
  %v217 = vld [vmem:[%s5 + $0x30] sm:$0xf]
  %v218 = vld [vmem:[%s5 + $0x34] sm:$0xf]
  %v219 = vld [vmem:[%s5 + $0x38] sm:$0xf]
  %v220 = vld [vmem:[%s5 + $0x3c] sm:$0xf]
  %v221 = vld [vmem:[#allocation2] sm:$0x1]
  %v223 = vlaneseq
  %v224 = vshrl.u32 %v223, 7
  %v225 = vsub.s32 0, %v224
  %v226 = vrot.slane %v221, %v225
  %v244 = vunpack.c.l.b16 %v205
  %v245 = vunpack.c.l.b16 %v206
  %v246 = vunpack.c.l.b16 %v207
  %v247 = vunpack.c.l.b16 %v208
  %v248 = vunpack.c.l.b16 %v209
  %v249 = vunpack.c.l.b16 %v210
  %v250 = vunpack.c.l.b16 %v211
  %v251 = vunpack.c.l.b16 %v212
  %v252 = vunpack.c.l.b16 %v213
  %v253 = vunpack.c.l.b16 %v214
  %v254 = vunpack.c.l.b16 %v215
  %v255 = vunpack.c.l.b16 %v216
  %v256 = vunpack.c.l.b16 %v217
  %v257 = vunpack.c.l.b16 %v218
  %v258 = vunpack.c.l.b16 %v219
  %v259 = vunpack.c.l.b16 %v220
  %v260 = vpack.c.b16 %v245, %v244
  %v261 = vpack.c.b16 %v247, %v246
  %v262 = vpack.c.b16 %v249, %v248
  %v263 = vpack.c.b16 %v251, %v250
  %v264 = vpack.c.b16 %v253, %v252
  %v265 = vpack.c.b16 %v255, %v254
  %v266 = vpack.c.b16 %v257, %v256
  %v267 = vpack.c.b16 %v259, %v258
  %276 = vmatprep.subr.bf16.mxu0 0
  %277 = vmatpush1.bf16.msra.mxu0 %v260
  %278 = vmatprep.subr.bf16.mxu0 0
  %279 = vmatpush1.bf16.msra.mxu0 %v261
  %280 = vmatprep.subr.bf16.mxu0 0
  %281 = vmatpush1.bf16.msra.mxu0 %v262
  %282 = vmatprep.subr.bf16.mxu0 0
  %283 = vmatpush1.bf16.msra.mxu0 %v263
  %284 = vmatprep.subr.bf16.mxu0 0
  %285 = vmatpush1.bf16.msra.mxu0 %v264
  %286 = vmatprep.subr.bf16.mxu0 0
  %287 = vmatpush1.bf16.msra.mxu0 %v265
  %288 = vmatprep.subr.bf16.mxu0 0
  %289 = vmatpush1.bf16.msra.mxu0 %v266
  %290 = vmatprep.subr.bf16.mxu0 0
  %291 = vmatpush1.bf16.msra.mxu0 %v267
  %292 = vmatprep.subr.bf16.mxu0 0
  %293 = vmatpush1.bf16.msra.mxu0 0
  %294 = vmatprep.subr.bf16.mxu0 0
  %295 = vmatpush1.bf16.msra.mxu0 0
  %296 = vmatprep.subr.bf16.mxu0 0
  %297 = vmatpush1.bf16.msra.mxu0 0
  %298 = vmatprep.subr.bf16.mxu0 0
  %299 = vmatpush1.bf16.msra.mxu0 0
  %300 = vmatprep.subr.bf16.mxu0 0
  %301 = vmatpush1.bf16.msra.mxu0 0
  %302 = vmatprep.subr.bf16.mxu0 0
  %303 = vmatpush1.bf16.msra.mxu0 0
  %304 = vmatprep.subr.bf16.mxu0 0
  %305 = vmatpush1.bf16.msra.mxu0 0
  %306 = vmatprep.subr.bf16.mxu0 0
  %307 = vmatpush1.bf16.msra.mxu0 0
  %308 = vmatprep.mubr.bf16.mxu0 0
  %309 = vmatmul.mubr.bf16.gmra.mrb[0].mxu0 %v204
  %v310 = vpop.f32.mrb[0].mxu0
  %v311 = vadd.f32 %v226, %v310
  %v312 = vpop.f32.mrb[0].mxu0
  %v313 = vpop.f32.mrb[0].mxu0
  %v314 = vpop.f32.mrb[0].mxu0
  %315 = vdwg.mxu0
  %vm316 = vcmask 7168
  %317 = vst.msk [vmem:[%s7] sm:$0xff] %vm316, %v311
  // Predicated region
  $region30: #{tpu_custom_call.1} parent=0 // pred_check
    _
  $region31: #{tpu_custom_call.1} parent=0 // pred_check_branch
    %319 = sbr.rel (0) target = $region33
  $region32: #{tpu_custom_call.1} parent=0 // pred_region
    _
  $region33: #{tpu_custom_call.1} parent=0 // pred_fallthru
    _
  // Predicated region
  $region34: #{tpu_custom_call.1} parent=0 // pred_check
    _
  $region35: #{tpu_custom_call.1} parent=0 // pred_check_branch
    %321 = sbr.rel (0) target = $region37
  $region36: #{tpu_custom_call.1} parent=0 // pred_region
    _
  $region37: #{tpu_custom_call.1} parent=0 // pred_fallthru
    _

// kernel: tpu_custom_call.1
$region0: #{tpu_custom_call.1}
  #allocation0 [shape = 'u32[]', space=smem, size = 0x4, offset = 0x4, fixed_abs, tag = 'smem constant byte address 0x4 - core index']
  #allocation1 [shape = 'u32[144,128]{1,0:T(1,128)}', space=vmem, size = 0x12000, scoped, tag = 'internal scratch']
  #allocation2 [shape = 'f32[1,1]{1,0:T(1,128)S(1)}', space=vmem, size = 0x200, scoped, tag = 'scoped memory for tpu_custom_call.1']
  %s0 = inlined_call_operand.vmem [shape: f32[8,5], index: 0, kind: input, shape index: {}]
  %s1 = inlined_call_operand.vmem [shape: bf16[5,128], index: 1, kind: input, shape index: {}]
  %s2 = inlined_call_operand.vmem [shape: f32[1,128], index: 2, kind: input, shape index: {}]
  %s3 = inlined_call_operand.vmem [shape: bf16[128,128], index: 3, kind: input, shape index: {}]
  %s4 = inlined_call_operand.vmem [shape: f32[1,128], index: 4, kind: input, shape index: {}]
  %s5 = inlined_call_operand.vmem [shape: bf16[128,1], index: 5, kind: input, shape index: {}]
  %s6 = inlined_call_operand.<no memory space> [shape: f32[1,1], index: 6, kind: input, shape index: {}]
  %s7 = inlined_call_operand.vmem [shape: f32[8,1], index: 7, kind: output, shape index: {}]
  %s8 = sld [smem:[#allocation0]]
  $region38: #{tpu_custom_call.1} parent=0
    _
  %s10 = ssub.s32 1, %s8
  %s11 = scalar_select 0, %s10, %s8
  %v12 = vstv %s6
  %13 = vst [vmem:[#allocation2] sm:$0x1] %v12
  // Predicated region
  $region2: #{tpu_custom_call.1} parent=0 // pred_check
    _
  $region3: #{tpu_custom_call.1} parent=0 // pred_check_branch
    %15 = sbr.rel (0) target = $region5
  $region4: #{tpu_custom_call.1} parent=0 // pred_region
    _
  $region5: #{tpu_custom_call.1} parent=0 // pred_fallthru
    _
  // Predicated region
  $region6: #{tpu_custom_call.1} parent=0 // pred_check
    _
  $region7: #{tpu_custom_call.1} parent=0 // pred_check_branch
    %17 = sbr.rel (0) target = $region9
  $region8: #{tpu_custom_call.1} parent=0 // pred_region
    _
  $region9: #{tpu_custom_call.1} parent=0 // pred_fallthru
    _
  // Predicated region
  $region10: #{tpu_custom_call.1} parent=0 // pred_check
    _
  $region11: #{tpu_custom_call.1} parent=0 // pred_check_branch
    %19 = sbr.rel (0) target = $region13
  $region12: #{tpu_custom_call.1} parent=0 // pred_region
    _
  $region13: #{tpu_custom_call.1} parent=0 // pred_fallthru
    _
  // Predicated region
  $region14: #{tpu_custom_call.1} parent=0 // pred_check
    _
  $region15: #{tpu_custom_call.1} parent=0 // pred_check_branch
    %21 = sbr.rel (0) target = $region17
  $region16: #{tpu_custom_call.1} parent=0 // pred_region
    _
  $region17: #{tpu_custom_call.1} parent=0 // pred_fallthru
    _
  // Predicated region
  $region18: #{tpu_custom_call.1} parent=0 // pred_check
    _
  $region19: #{tpu_custom_call.1} parent=0 // pred_check_branch
    %23 = sbr.rel (0) target = $region21
  $region20: #{tpu_custom_call.1} parent=0 // pred_region
    _
  $region21: #{tpu_custom_call.1} parent=0 // pred_fallthru
    _
  // Predicated region
  $region22: #{tpu_custom_call.1} parent=0 // pred_check
    _
  $region23: #{tpu_custom_call.1} parent=0 // pred_check_branch
    %25 = sbr.rel (0) target = $region25
  $region24: #{tpu_custom_call.1} parent=0 // pred_region
    _
  $region25: #{tpu_custom_call.1} parent=0 // pred_fallthru
    _
  // Predicated region
  $region26: #{tpu_custom_call.1} parent=0 // pred_check
    _
  $region27: #{tpu_custom_call.1} parent=0 // pred_check_branch
    %27 = sbr.rel (0) target = $region29
  $region28: #{tpu_custom_call.1} parent=0 // pred_region
    _
  $region29: #{tpu_custom_call.1} parent=0 // pred_fallthru
    _
  %v29 = vld [vmem:[%s0] sm:$0xff]
  %v30 = vpack.c.bf16 %v29, %v29
  %v31 = vld [vmem:[%s1] sm:$0x7]
  %v32 = vld [vmem:[%s2] sm:$0x1]
  %v34 = vlaneseq
  %v35 = vshrl.u32 %v34, 7
  %v36 = vsub.s32 0, %v35
  %v37 = vrot.slane %v32, %v36
  %vm39 = vcmask 39936
  %v41 = vsel %vm39, %v30, 0
  %vm43 = vcmask 1041408
  %vm44 = vcmask 1042432
  %v45 = vsel %vm43, 4294967295, 65535
  %v46 = vsel %vm44, %v45, 0
  %v48 = vand.u32 %v31, %v46
  %50 = vmatprep.subr.bf16.mxu0 0
  %51 = vmatpush1.bf16.msra.mxu0 %v48
  %52 = vmatprep.subr.bf16.mxu0 0
  %53 = vmatpush1.bf16.msra.mxu0 0
  %54 = vmatprep.subr.bf16.mxu0 0
  %55 = vmatpush1.bf16.msra.mxu0 0
  %56 = vmatprep.subr.bf16.mxu0 0
  %57 = vmatpush1.bf16.msra.mxu0 0
  %58 = vmatprep.subr.bf16.mxu0 0
  %59 = vmatpush1.bf16.msra.mxu0 0
  %60 = vmatprep.subr.bf16.mxu0 0
  %61 = vmatpush1.bf16.msra.mxu0 0
  %62 = vmatprep.subr.bf16.mxu0 0
  %63 = vmatpush1.bf16.msra.mxu0 0
  %64 = vmatprep.subr.bf16.mxu0 0
  %65 = vmatpush1.bf16.msra.mxu0 0
  %66 = vmatprep.subr.bf16.mxu0 0
  %67 = vmatpush1.bf16.msra.mxu0 0
  %68 = vmatprep.subr.bf16.mxu0 0
  %69 = vmatpush1.bf16.msra.mxu0 0
  %70 = vmatprep.subr.bf16.mxu0 0
  %71 = vmatpush1.bf16.msra.mxu0 0
  %72 = vmatprep.subr.bf16.mxu0 0
  %73 = vmatpush1.bf16.msra.mxu0 0
  %74 = vmatprep.subr.bf16.mxu0 0
  %75 = vmatpush1.bf16.msra.mxu0 0
  %76 = vmatprep.subr.bf16.mxu0 0
  %77 = vmatpush1.bf16.msra.mxu0 0
  %78 = vmatprep.subr.bf16.mxu0 0
  %79 = vmatpush1.bf16.msra.mxu0 0
  %80 = vmatprep.subr.bf16.mxu0 0
  %81 = vmatpush1.bf16.msra.mxu0 0
  %82 = vmatprep.mubr.bf16.mxu0 0
  %83 = vmatmul.mubr.bf16.gmra.mrb[0].mxu0 %v41
  %v84 = vpop.f32.mrb[0].mxu0
  %v85 = vadd.f32 %v37, %v84
  %v86 = vpop.f32.mrb[0].mxu0
  %v87 = vpop.f32.mrb[0].mxu0
  %v88 = vpop.f32.mrb[0].mxu0
  %89 = vdwg.mxu0
  %v90 = vpack.c.bf16 %v85, %v85
  %v91 = vmax.bf16 %v90, 0
  %v92 = vld [vmem:[%s3] sm:$0xf]
  %v93 = vld [vmem:[%s3 + $0x4] sm:$0xf]
  %v94 = vld [vmem:[%s3 + $0x8] sm:$0xf]
  %v95 = vld [vmem:[%s3 + $0xc] sm:$0xf]
  %v96 = vld [vmem:[%s3 + $0x10] sm:$0xf]
  %v97 = vld [vmem:[%s3 + $0x14] sm:$0xf]
  %v98 = vld [vmem:[%s3 + $0x18] sm:$0xf]
  %v99 = vld [vmem:[%s3 + $0x1c] sm:$0xf]
  %v100 = vld [vmem:[%s3 + $0x20] sm:$0xf]
  %v101 = vld [vmem:[%s3 + $0x24] sm:$0xf]
  %v102 = vld [vmem:[%s3 + $0x28] sm:$0xf]
  %v103 = vld [vmem:[%s3 + $0x2c] sm:$0xf]
  %v104 = vld [vmem:[%s3 + $0x30] sm:$0xf]
  %v105 = vld [vmem:[%s3 + $0x34] sm:$0xf]
  %v106 = vld [vmem:[%s3 + $0x38] sm:$0xf]
  %v107 = vld [vmem:[%s3 + $0x3c] sm:$0xf]
  %v108 = vld [vmem:[%s4] sm:$0x1]
  %v110 = vlaneseq
  %v111 = vshrl.u32 %v110, 7
  %v112 = vsub.s32 0, %v111
  %v113 = vrot.slane %v108, %v112
  %v131 = vunpack.c.l.b16 %v92
  %v132 = vunpack.c.l.b16 %v93
  %v133 = vunpack.c.l.b16 %v94
  %v134 = vunpack.c.l.b16 %v95
  %v135 = vunpack.c.l.b16 %v96
  %v136 = vunpack.c.l.b16 %v97
  %v137 = vunpack.c.l.b16 %v98
  %v138 = vunpack.c.l.b16 %v99
  %v139 = vunpack.c.l.b16 %v100
  %v140 = vunpack.c.l.b16 %v101
  %v141 = vunpack.c.l.b16 %v102
  %v142 = vunpack.c.l.b16 %v103
  %v143 = vunpack.c.l.b16 %v104
  %v144 = vunpack.c.l.b16 %v105
  %v145 = vunpack.c.l.b16 %v106
  %v146 = vunpack.c.l.b16 %v107
  %v147 = vpack.c.b16 %v132, %v131
  %v148 = vpack.c.b16 %v134, %v133
  %v149 = vpack.c.b16 %v136, %v135
  %v150 = vpack.c.b16 %v138, %v137
  %v151 = vpack.c.b16 %v140, %v139
  %v152 = vpack.c.b16 %v142, %v141
  %v153 = vpack.c.b16 %v144, %v143
  %v154 = vpack.c.b16 %v146, %v145
  %163 = vmatprep.subr.bf16.mxu0 0
  %164 = vmatpush1.bf16.msra.mxu0 %v147
  %165 = vmatprep.subr.bf16.mxu0 0
  %166 = vmatpush1.bf16.msra.mxu0 %v148
  %167 = vmatprep.subr.bf16.mxu0 0
  %168 = vmatpush1.bf16.msra.mxu0 %v149
  %169 = vmatprep.subr.bf16.mxu0 0
  %170 = vmatpush1.bf16.msra.mxu0 %v150
  %171 = vmatprep.subr.bf16.mxu0 0
  %172 = vmatpush1.bf16.msra.mxu0 %v151
  %173 = vmatprep.subr.bf16.mxu0 0
  %174 = vmatpush1.bf16.msra.mxu0 %v152
  %175 = vmatprep.subr.bf16.mxu0 0
  %176 = vmatpush1.bf16.msra.mxu0 %v153
  %177 = vmatprep.subr.bf16.mxu0 0
  %178 = vmatpush1.bf16.msra.mxu0 %v154
  %179 = vmatprep.subr.bf16.mxu0 0
  %180 = vmatpush1.bf16.msra.mxu0 0
  %181 = vmatprep.subr.bf16.mxu0 0
  %182 = vmatpush1.bf16.msra.mxu0 0
  %183 = vmatprep.subr.bf16.mxu0 0
  %184 = vmatpush1.bf16.msra.mxu0 0
  %185 = vmatprep.subr.bf16.mxu0 0
  %186 = vmatpush1.bf16.msra.mxu0 0
  %187 = vmatprep.subr.bf16.mxu0 0
  %188 = vmatpush1.bf16.msra.mxu0 0
  %189 = vmatprep.subr.bf16.mxu0 0
  %190 = vmatpush1.bf16.msra.mxu0 0
  %191 = vmatprep.subr.bf16.mxu0 0
  %192 = vmatpush1.bf16.msra.mxu0 0
  %193 = vmatprep.subr.bf16.mxu0 0
  %194 = vmatpush1.bf16.msra.mxu0 0
  %195 = vmatprep.mubr.bf16.mxu0 0
  %196 = vmatmul.mubr.bf16.gmra.mrb[0].mxu0 %v91
  %v197 = vpop.f32.mrb[0].mxu0
  %v198 = vadd.f32 %v113, %v197
  %v199 = vpop.f32.mrb[0].mxu0
  %v200 = vpop.f32.mrb[0].mxu0
  %v201 = vpop.f32.mrb[0].mxu0
  %202 = vdwg.mxu0
  %v203 = vpack.c.bf16 %v198, %v198
  %v204 = vmax.bf16 %v203, 0
  %v205 = vld [vmem:[%s5] sm:$0xf]
  %v206 = vld [vmem:[%s5 + $0x4] sm:$0xf]
  %v207 = vld [vmem:[%s5 + $0x8] sm:$0xf]
  %v208 = vld [vmem:[%s5 + $0xc] sm:$0xf]
  %v209 = vld [vmem:[%s5 + $0x10] sm:$0xf]
  %v210 = vld [vmem:[%s5 + $0x14] sm:$0xf]
  %v211 = vld [vmem:[%s5 + $0x18] sm:$0xf]
  %v212 = vld [vmem:[%s5 + $0x1c] sm:$0xf]
  %v213 = vld [vmem:[%s5 + $0x20] sm:$0xf]
  %v214 = vld [vmem:[%s5 + $0x24] sm:$0xf]
  %v215 = vld [vmem:[%s5 + $0x28] sm:$0xf]
  %v216 = vld [vmem:[%s5 + $0x2c] sm:$0xf]
  %v217 = vld [vmem:[%s5 + $0x30] sm:$0xf]
  %v218 = vld [vmem:[%s5 + $0x34] sm:$0xf]
  %v219 = vld [vmem:[%s5 + $0x38] sm:$0xf]
  %v220 = vld [vmem:[%s5 + $0x3c] sm:$0xf]
  %v221 = vld [vmem:[#allocation2] sm:$0x1]
  %v223 = vlaneseq
  %v224 = vshrl.u32 %v223, 7
  %v225 = vsub.s32 0, %v224
  %v226 = vrot.slane %v221, %v225
  %v244 = vunpack.c.l.b16 %v205
  %v245 = vunpack.c.l.b16 %v206
  %v246 = vunpack.c.l.b16 %v207
  %v247 = vunpack.c.l.b16 %v208
  %v248 = vunpack.c.l.b16 %v209
  %v249 = vunpack.c.l.b16 %v210
  %v250 = vunpack.c.l.b16 %v211
  %v251 = vunpack.c.l.b16 %v212
  %v252 = vunpack.c.l.b16 %v213
  %v253 = vunpack.c.l.b16 %v214
  %v254 = vunpack.c.l.b16 %v215
  %v255 = vunpack.c.l.b16 %v216
  %v256 = vunpack.c.l.b16 %v217
  %v257 = vunpack.c.l.b16 %v218
  %v258 = vunpack.c.l.b16 %v219
  %v259 = vunpack.c.l.b16 %v220
  %v260 = vpack.c.b16 %v245, %v244
  %v261 = vpack.c.b16 %v247, %v246
  %v262 = vpack.c.b16 %v249, %v248
  %v263 = vpack.c.b16 %v251, %v250
  %v264 = vpack.c.b16 %v253, %v252
  %v265 = vpack.c.b16 %v255, %v254
  %v266 = vpack.c.b16 %v257, %v256
  %v267 = vpack.c.b16 %v259, %v258
  %276 = vmatprep.subr.bf16.mxu0 0
  %277 = vmatpush1.bf16.msra.mxu0 %v260
  %278 = vmatprep.subr.bf16.mxu0 0
  %279 = vmatpush1.bf16.msra.mxu0 %v261
  %280 = vmatprep.subr.bf16.mxu0 0
  %281 = vmatpush1.bf16.msra.mxu0 %v262
  %282 = vmatprep.subr.bf16.mxu0 0
  %283 = vmatpush1.bf16.msra.mxu0 %v263
  %284 = vmatprep.subr.bf16.mxu0 0
  %285 = vmatpush1.bf16.msra.mxu0 %v264
  %286 = vmatprep.subr.bf16.mxu0 0
  %287 = vmatpush1.bf16.msra.mxu0 %v265
  %288 = vmatprep.subr.bf16.mxu0 0
  %289 = vmatpush1.bf16.msra.mxu0 %v266
  %290 = vmatprep.subr.bf16.mxu0 0
  %291 = vmatpush1.bf16.msra.mxu0 %v267
  %292 = vmatprep.subr.bf16.mxu0 0
  %293 = vmatpush1.bf16.msra.mxu0 0
  %294 = vmatprep.subr.bf16.mxu0 0
  %295 = vmatpush1.bf16.msra.mxu0 0
  %296 = vmatprep.subr.bf16.mxu0 0
  %297 = vmatpush1.bf16.msra.mxu0 0
  %298 = vmatprep.subr.bf16.mxu0 0
  %299 = vmatpush1.bf16.msra.mxu0 0
  %300 = vmatprep.subr.bf16.mxu0 0
  %301 = vmatpush1.bf16.msra.mxu0 0
  %302 = vmatprep.subr.bf16.mxu0 0
  %303 = vmatpush1.bf16.msra.mxu0 0
  %304 = vmatprep.subr.bf16.mxu0 0
  %305 = vmatpush1.bf16.msra.mxu0 0
  %306 = vmatprep.subr.bf16.mxu0 0
  %307 = vmatpush1.bf16.msra.mxu0 0
  %308 = vmatprep.mubr.bf16.mxu0 0
  %309 = vmatmul.mubr.bf16.gmra.mrb[0].mxu0 %v204
  %v310 = vpop.f32.mrb[0].mxu0
  %v311 = vadd.f32 %v226, %v310
  %v312 = vpop.f32.mrb[0].mxu0
  %v313 = vpop.f32.mrb[0].mxu0
  %v314 = vpop.f32.mrb[0].mxu0
  %315 = vdwg.mxu0
  %vm316 = vcmask 7168
  %317 = vst.msk [vmem:[%s7] sm:$0xff] %vm316, %v311
  // Predicated region
  $region30: #{tpu_custom_call.1} parent=0 // pred_check
    _
  $region31: #{tpu_custom_call.1} parent=0 // pred_check_branch
    %319 = sbr.rel (0) target = $region33
  $region32: #{tpu_custom_call.1} parent=0 // pred_region
    _
  $region33: #{tpu_custom_call.1} parent=0 // pred_fallthru
    _
  // Predicated region
  $region34: #{tpu_custom_call.1} parent=0 // pred_check
    _
  $region35: #{tpu_custom_call.1} parent=0 // pred_check_branch
    %321 = sbr.rel (0) target = $region37
  $region36: #{tpu_custom_call.1} parent=0 // pred_region
    _
  $region37: #{tpu_custom_call.1} parent=0 // pred_fallthru
    _

</llo_original>
